<compile_context>
chip_gen: v5e
topology: v5e:2x2
jax: 0.10.0
libtpu: 0.0.40
codegen_flags: <defaults>
</compile_context>

<pallas_src>
import jax
import jax.numpy as jnp
from jax import lax
from jax.experimental import pallas as pl
from jax.experimental.pallas import tpu as pltpu


HP = 128   # per-gate lane-aligned padded hidden width (H=50 -> 128)
OP = 128   # lane-aligned padded output width (O=1 -> 128) for unmasked stores
SUB = 8    # sublane multiple for the batch dimension


def gru_kernel(gi_ref, whh_ref, bhn_ref, wfc_ref, bfc_ref, out_ref):
    """Single-invocation GRU recurrence + final linear layer.

    gi_ref  : (S, Bp, 3*HP) precomputed x@W_ih + combined biases, gates [r|z|n]
              in separate 128-lane blocks (lanes >= H are zero).
    whh_ref : (HP, 3*HP)    fused hidden->hidden weights (padded rows/cols zero).
    bhn_ref : (1, HP)       b_hh for the n gate (only bias that must stay in-loop).
    wfc_ref : (HP, OP)      final linear weight, rows >= H / cols >= O are zero.
    bfc_ref : (1, OP)       final linear bias (cols >= O are zero).
    out_ref : (Bp, OP)      lane-dense padded network output.
    """
    S, Bp, _ = gi_ref.shape
    Hp = whh_ref.shape[0]

    # Loop-invariant operands: load / broadcast once, outside the recurrence.
    whh = whh_ref[...]                                    # (Hp, 3*Hp)
    bhn = jnp.broadcast_to(bhn_ref[...], (Bp, Hp))        # hoisted broadcast

    def step(t, h):
        gi = gi_ref[t]                                    # (Bp, 3*Hp)
        # One fused MXU pass per timestep for all three gates.
        gh = jnp.dot(h, whh, preferred_element_type=jnp.float32)   # (Bp, 3*Hp)
        # Static, lane-aligned gate slices.
        r = jax.nn.sigmoid(gi[:, 0:Hp] + gh[:, 0:Hp])
        z = jax.nn.sigmoid(gi[:, Hp:2 * Hp] + gh[:, Hp:2 * Hp])
        n = jnp.tanh(gi[:, 2 * Hp:3 * Hp] + r * (gh[:, 2 * Hp:3 * Hp] + bhn))
        return (1.0 - z) * n + z * h

    h_last = lax.fori_loop(0, S, step, jnp.zeros((Bp, Hp), jnp.float32),
                           unroll=True)

    out_ref[...] = (
        jnp.dot(h_last, wfc_ref[...], preferred_element_type=jnp.float32)
        + bfc_ref[...]
    )


def _round_up(v, m):
    return ((v + m - 1) // m) * m


@jax.jit
def gru_net_forward(x, w_ih, w_hh, b_ih, b_hh, w_fc, b_fc):
    """x: (B, S, I) float32 -> (B, O) float32.

    Weight convention (gate order [r, z, n], PyTorch semantics, transposed storage):
      w_ih: (3, I, H)   w_hh: (3, H, H)   b_ih, b_hh: (3, H)
      w_fc: (H, O)      b_fc: (1, O)
    """
    B, S, I = x.shape
    H = w_hh.shape[-1]
    O = w_fc.shape[-1]
    Hp = HP
    Op = OP
    Bp = _round_up(max(B, SUB), SUB)

    # ---- pack weights into lane-aligned, gate-stacked layouts (one-time XLA work) ----
    w_ih_s = jnp.zeros((I, 3 * Hp), jnp.float32)
    w_hh_s = jnp.zeros((Hp, 3 * Hp), jnp.float32)
    bias_s = jnp.zeros((3 * Hp,), jnp.float32)
    for g in range(3):
        w_ih_s = w_ih_s.at[:, g * Hp:g * Hp + H].set(w_ih[g])
        w_hh_s = w_hh_s.at[:H, g * Hp:g * Hp + H].set(w_hh[g])
    # r, z: combine input+hidden biases; n: only the input bias (b_hh_n is gated by r).
    bias_s = bias_s.at[0 * Hp:0 * Hp + H].set(b_ih[0] + b_hh[0])
    bias_s = bias_s.at[1 * Hp:1 * Hp + H].set(b_ih[1] + b_hh[1])
    bias_s = bias_s.at[2 * Hp:2 * Hp + H].set(b_ih[2])

    bhn = jnp.zeros((1, Hp), jnp.float32).at[0, :H].set(b_hh[2])
    w_fc_p = jnp.zeros((Hp, Op), jnp.float32).at[:H, :O].set(w_fc)
    b_fc_p = jnp.zeros((1, Op), jnp.float32).at[:, :O].set(b_fc)

    # ---- hoist the input-side gate pre-activations out of the recurrence ----
    # Pad batch to a sublane multiple (padded rows are discarded after the kernel).
    x_p = jnp.zeros((Bp, S, I), jnp.float32).at[:B].set(x.astype(jnp.float32))
    x_tm = jnp.transpose(x_p, (1, 0, 2))                      # (S, Bp, I) time-major
    gi = jnp.einsum("sbi,ij->sbj", x_tm, w_ih_s) + bias_s     # (S, Bp, 3*Hp)
    gi = gi.astype(jnp.float32)

    # ---- single-invocation Pallas kernel (everything fits comfortably in VMEM) ----
    out_p = pl.pallas_call(
        gru_kernel,
        out_shape=jax.ShapeDtypeStruct((Bp, Op), jnp.float32),
        in_specs=[
            pl.BlockSpec(memory_space=pltpu.MemorySpace.VMEM),  # gi
            pl.BlockSpec(memory_space=pltpu.MemorySpace.VMEM),  # w_hh fused
            pl.BlockSpec(memory_space=pltpu.MemorySpace.VMEM),  # b_hh[n]
            pl.BlockSpec(memory_space=pltpu.MemorySpace.VMEM),  # w_fc padded
            pl.BlockSpec(memory_space=pltpu.MemorySpace.VMEM),  # b_fc padded
        ],
        out_specs=pl.BlockSpec(memory_space=pltpu.MemorySpace.VMEM),
    )(gi, w_hh_s, bhn, w_fc_p, b_fc_p)

    return out_p[:B, :O]


def gru_net_reference(x, w_ih, w_hh, b_ih, b_hh, w_fc, b_fc):
    """Pure-JAX reference replicating torch.nn.GRU + Linear semantics."""
    B, S, I = x.shape
    H = w_hh.shape[-1]
    h0 = jnp.zeros((B, H), jnp.float32)

    def step(h, x_t):
        gi = [x_t @ w_ih[g] + b_ih[g] for g in range(3)]
        gh = [h @ w_hh[g] + b_hh[g] for g in range(3)]
        r = jax.nn.sigmoid(gi[0] + gh[0])
        z = jax.nn.sigmoid(gi[1] + gh[1])
        n = jnp.tanh(gi[2] + r * gh[2])
        h_new = (1.0 - z) * n + z * h
        return h_new, None

    h_last, _ = lax.scan(step, h0, jnp.transpose(x, (1, 0, 2)))
    return h_last @ w_fc + b_fc


if __name__ == "__main__":
    # GRU(input_size=1, hidden=50), Linear(50, 1); batch=4, seq=8.
    B, S, I, H, O = 4, 8, 1, 50, 1

    key = jax.random.PRNGKey(0)
    ks = jax.random.split(key, 7)
    bound = 1.0 / jnp.sqrt(jnp.float32(H))  # PyTorch default uniform bound

    # Gate order [r, z, n]; weights stored transposed vs. PyTorch (in_dim, H).
    w_ih = jax.random.uniform(ks[0], (3, I, H), jnp.float32, -bound, bound)
    w_hh = jax.random.uniform(ks[1], (3, H, H), jnp.float32, -bound, bound)
    b_ih = jax.random.uniform(ks[2], (3, H), jnp.float32, -bound, bound)
    b_hh = jax.random.uniform(ks[3], (3, H), jnp.float32, -bound, bound)
    w_fc = jax.random.uniform(ks[4], (H, O), jnp.float32, -bound, bound)
    b_fc = jax.random.uniform(ks[5], (1, O), jnp.float32, -bound, bound)

    x = jax.random.normal(ks[6], (B, S, I), jnp.float32)

    out = gru_net_forward(x, w_ih, w_hh, b_ih, b_hh, w_fc, b_fc)
    out = jax.block_until_ready(out)

    ref = gru_net_reference(x, w_ih, w_hh, b_ih, b_hh, w_fc, b_fc)
    assert out.shape == (B, O), out.shape
    assert jnp.allclose(out, ref, atol=1e-5, rtol=1e-5), (out, ref)

    print("KERNEL_OK")
</pallas_src>

<mosaic_0001>
module attributes {stable_mosaic.version = 11 : i64} {
  func.func @gru_kernel(%arg0: memref<8x8x384xf32, #tpu.memory_space<vmem>>, %arg1: memref<128x384xf32, #tpu.memory_space<vmem>>, %arg2: memref<1x128xf32, #tpu.memory_space<vmem>>, %arg3: memref<128x128xf32, #tpu.memory_space<vmem>>, %arg4: memref<1x128xf32, #tpu.memory_space<vmem>>, %arg5: memref<8x128xf32, #tpu.memory_space<vmem>>) attributes {dimension_semantics = [], scalar_prefetch = 0 : i64, scratch_operands = 0 : i64, tpu.core_type = #tpu.core_type<tc>} {
    %c0 = arith.constant 0 : index
    %c0_0 = arith.constant 0 : index
    %0 = vector.load %arg1[%c0, %c0_0] : memref<128x384xf32, #tpu.memory_space<vmem>>, vector<128x384xf32>
    %c0_1 = arith.constant 0 : index
    %c0_2 = arith.constant 0 : index
    %1 = vector.load %arg2[%c0_1, %c0_2] : memref<1x128xf32, #tpu.memory_space<vmem>>, vector<1x128xf32>
    %2 = vector.shape_cast %1 : vector<1x128xf32> to vector<1x128xf32>
    %3 = vector.broadcast %2 : vector<1x128xf32> to vector<8x128xf32>
    %cst = arith.constant 0.000000e+00 : f32
    %4 = vector.broadcast %cst : f32 to vector<8x128xf32>
    %c0_i32 = arith.constant 0 : i32
    %5 = arith.index_cast %c0_i32 : i32 to index
    %c0_3 = arith.constant 0 : index
    %c0_4 = arith.constant 0 : index
    %6 = vector.load %arg0[%5, %c0_3, %c0_4] : memref<8x8x384xf32, #tpu.memory_space<vmem>>, vector<1x8x384xf32>
    %7 = vector.shape_cast %6 : vector<1x8x384xf32> to vector<8x384xf32>
    %cst_5 = arith.constant dense<0.000000e+00> : vector<8x384xf32>
    %8 = tpu.matmul %4, %0, %cst_5 {dimension_numbers = #tpu.dot_dimension_numbers<[1], [0], [0], [1], [0, 0, 1, 1], [], []>} : vector<8x128xf32>, vector<128x384xf32>, vector<8x384xf32> -> vector<8x384xf32>
    %9 = vector.extract_strided_slice %7 {offsets = [0, 0], sizes = [8, 128], strides = [1, 1]} : vector<8x384xf32> to vector<8x128xf32>
    %10 = vector.extract_strided_slice %8 {offsets = [0, 0], sizes = [8, 128], strides = [1, 1]} : vector<8x384xf32> to vector<8x128xf32>
    %11 = arith.addf %9, %10 : vector<8x128xf32>
    %12 = arith.negf %11 : vector<8x128xf32>
    %13 = math.exp %12 : vector<8x128xf32>
    %cst_6 = arith.constant 1.000000e+00 : f32
    %14 = vector.broadcast %cst_6 : f32 to vector<8x128xf32>
    %15 = arith.addf %14, %13 : vector<8x128xf32>
    %16 = arith.divf %14, %15 : vector<8x128xf32>
    %17 = vector.extract_strided_slice %7 {offsets = [0, 128], sizes = [8, 128], strides = [1, 1]} : vector<8x384xf32> to vector<8x128xf32>
    %18 = vector.extract_strided_slice %8 {offsets = [0, 128], sizes = [8, 128], strides = [1, 1]} : vector<8x384xf32> to vector<8x128xf32>
    %19 = arith.addf %17, %18 : vector<8x128xf32>
    %20 = arith.negf %19 : vector<8x128xf32>
    %21 = math.exp %20 : vector<8x128xf32>
    %cst_7 = arith.constant 1.000000e+00 : f32
    %22 = vector.broadcast %cst_7 : f32 to vector<8x128xf32>
    %23 = arith.addf %22, %21 : vector<8x128xf32>
    %24 = arith.divf %22, %23 : vector<8x128xf32>
    %25 = vector.extract_strided_slice %7 {offsets = [0, 256], sizes = [8, 128], strides = [1, 1]} : vector<8x384xf32> to vector<8x128xf32>
    %26 = vector.extract_strided_slice %8 {offsets = [0, 256], sizes = [8, 128], strides = [1, 1]} : vector<8x384xf32> to vector<8x128xf32>
    %27 = arith.addf %26, %3 : vector<8x128xf32>
    %28 = arith.mulf %16, %27 : vector<8x128xf32>
    %29 = arith.addf %25, %28 : vector<8x128xf32>
    %30 = math.tanh %29 : vector<8x128xf32>
    %cst_8 = arith.constant 1.000000e+00 : f32
    %31 = vector.broadcast %cst_8 : f32 to vector<8x128xf32>
    %32 = arith.subf %31, %24 : vector<8x128xf32>
    %33 = arith.mulf %32, %30 : vector<8x128xf32>
    %34 = arith.mulf %24, %4 : vector<8x128xf32>
    %35 = arith.addf %33, %34 : vector<8x128xf32>
    %c1_i32 = arith.constant 1 : i32
    %36 = arith.index_cast %c1_i32 : i32 to index
    %c0_9 = arith.constant 0 : index
    %c0_10 = arith.constant 0 : index
    %37 = vector.load %arg0[%36, %c0_9, %c0_10] : memref<8x8x384xf32, #tpu.memory_space<vmem>>, vector<1x8x384xf32>
    %38 = vector.shape_cast %37 : vector<1x8x384xf32> to vector<8x384xf32>
    %cst_11 = arith.constant dense<0.000000e+00> : vector<8x384xf32>
    %39 = tpu.matmul %35, %0, %cst_11 {dimension_numbers = #tpu.dot_dimension_numbers<[1], [0], [0], [1], [0, 0, 1, 1], [], []>} : vector<8x128xf32>, vector<128x384xf32>, vector<8x384xf32> -> vector<8x384xf32>
    %40 = vector.extract_strided_slice %38 {offsets = [0, 0], sizes = [8, 128], strides = [1, 1]} : vector<8x384xf32> to vector<8x128xf32>
    %41 = vector.extract_strided_slice %39 {offsets = [0, 0], sizes = [8, 128], strides = [1, 1]} : vector<8x384xf32> to vector<8x128xf32>
    %42 = arith.addf %40, %41 : vector<8x128xf32>
    %43 = arith.negf %42 : vector<8x128xf32>
    %44 = math.exp %43 : vector<8x128xf32>
    %cst_12 = arith.constant 1.000000e+00 : f32
    %45 = vector.broadcast %cst_12 : f32 to vector<8x128xf32>
    %46 = arith.addf %45, %44 : vector<8x128xf32>
    %47 = arith.divf %45, %46 : vector<8x128xf32>
    %48 = vector.extract_strided_slice %38 {offsets = [0, 128], sizes = [8, 128], strides = [1, 1]} : vector<8x384xf32> to vector<8x128xf32>
    %49 = vector.extract_strided_slice %39 {offsets = [0, 128], sizes = [8, 128], strides = [1, 1]} : vector<8x384xf32> to vector<8x128xf32>
    %50 = arith.addf %48, %49 : vector<8x128xf32>
    %51 = arith.negf %50 : vector<8x128xf32>
    %52 = math.exp %51 : vector<8x128xf32>
    %cst_13 = arith.constant 1.000000e+00 : f32
    %53 = vector.broadcast %cst_13 : f32 to vector<8x128xf32>
    %54 = arith.addf %53, %52 : vector<8x128xf32>
    %55 = arith.divf %53, %54 : vector<8x128xf32>
    %56 = vector.extract_strided_slice %38 {offsets = [0, 256], sizes = [8, 128], strides = [1, 1]} : vector<8x384xf32> to vector<8x128xf32>
    %57 = vector.extract_strided_slice %39 {offsets = [0, 256], sizes = [8, 128], strides = [1, 1]} : vector<8x384xf32> to vector<8x128xf32>
    %58 = arith.addf %57, %3 : vector<8x128xf32>
    %59 = arith.mulf %47, %58 : vector<8x128xf32>
    %60 = arith.addf %56, %59 : vector<8x128xf32>
    %61 = math.tanh %60 : vector<8x128xf32>
    %cst_14 = arith.constant 1.000000e+00 : f32
    %62 = vector.broadcast %cst_14 : f32 to vector<8x128xf32>
    %63 = arith.subf %62, %55 : vector<8x128xf32>
    %64 = arith.mulf %63, %61 : vector<8x128xf32>
    %65 = arith.mulf %55, %35 : vector<8x128xf32>
    %66 = arith.addf %64, %65 : vector<8x128xf32>
    %c2_i32 = arith.constant 2 : i32
    %67 = arith.index_cast %c2_i32 : i32 to index
    %c0_15 = arith.constant 0 : index
    %c0_16 = arith.constant 0 : index
    %68 = vector.load %arg0[%67, %c0_15, %c0_16] : memref<8x8x384xf32, #tpu.memory_space<vmem>>, vector<1x8x384xf32>
    %69 = vector.shape_cast %68 : vector<1x8x384xf32> to vector<8x384xf32>
    %cst_17 = arith.constant dense<0.000000e+00> : vector<8x384xf32>
    %70 = tpu.matmul %66, %0, %cst_17 {dimension_numbers = #tpu.dot_dimension_numbers<[1], [0], [0], [1], [0, 0, 1, 1], [], []>} : vector<8x128xf32>, vector<128x384xf32>, vector<8x384xf32> -> vector<8x384xf32>
    %71 = vector.extract_strided_slice %69 {offsets = [0, 0], sizes = [8, 128], strides = [1, 1]} : vector<8x384xf32> to vector<8x128xf32>
    %72 = vector.extract_strided_slice %70 {offsets = [0, 0], sizes = [8, 128], strides = [1, 1]} : vector<8x384xf32> to vector<8x128xf32>
    %73 = arith.addf %71, %72 : vector<8x128xf32>
    %74 = arith.negf %73 : vector<8x128xf32>
    %75 = math.exp %74 : vector<8x128xf32>
    %cst_18 = arith.constant 1.000000e+00 : f32
    %76 = vector.broadcast %cst_18 : f32 to vector<8x128xf32>
    %77 = arith.addf %76, %75 : vector<8x128xf32>
    %78 = arith.divf %76, %77 : vector<8x128xf32>
    %79 = vector.extract_strided_slice %69 {offsets = [0, 128], sizes = [8, 128], strides = [1, 1]} : vector<8x384xf32> to vector<8x128xf32>
    %80 = vector.extract_strided_slice %70 {offsets = [0, 128], sizes = [8, 128], strides = [1, 1]} : vector<8x384xf32> to vector<8x128xf32>
    %81 = arith.addf %79, %80 : vector<8x128xf32>
    %82 = arith.negf %81 : vector<8x128xf32>
    %83 = math.exp %82 : vector<8x128xf32>
    %cst_19 = arith.constant 1.000000e+00 : f32
    %84 = vector.broadcast %cst_19 : f32 to vector<8x128xf32>
    %85 = arith.addf %84, %83 : vector<8x128xf32>
    %86 = arith.divf %84, %85 : vector<8x128xf32>
    %87 = vector.extract_strided_slice %69 {offsets = [0, 256], sizes = [8, 128], strides = [1, 1]} : vector<8x384xf32> to vector<8x128xf32>
    %88 = vector.extract_strided_slice %70 {offsets = [0, 256], sizes = [8, 128], strides = [1, 1]} : vector<8x384xf32> to vector<8x128xf32>
    %89 = arith.addf %88, %3 : vector<8x128xf32>
    %90 = arith.mulf %78, %89 : vector<8x128xf32>
    %91 = arith.addf %87, %90 : vector<8x128xf32>
    %92 = math.tanh %91 : vector<8x128xf32>
    %cst_20 = arith.constant 1.000000e+00 : f32
    %93 = vector.broadcast %cst_20 : f32 to vector<8x128xf32>
    %94 = arith.subf %93, %86 : vector<8x128xf32>
    %95 = arith.mulf %94, %92 : vector<8x128xf32>
    %96 = arith.mulf %86, %66 : vector<8x128xf32>
    %97 = arith.addf %95, %96 : vector<8x128xf32>
    %c3_i32 = arith.constant 3 : i32
    %98 = arith.index_cast %c3_i32 : i32 to index
    %c0_21 = arith.constant 0 : index
    %c0_22 = arith.constant 0 : index
    %99 = vector.load %arg0[%98, %c0_21, %c0_22] : memref<8x8x384xf32, #tpu.memory_space<vmem>>, vector<1x8x384xf32>
    %100 = vector.shape_cast %99 : vector<1x8x384xf32> to vector<8x384xf32>
    %cst_23 = arith.constant dense<0.000000e+00> : vector<8x384xf32>
    %101 = tpu.matmul %97, %0, %cst_23 {dimension_numbers = #tpu.dot_dimension_numbers<[1], [0], [0], [1], [0, 0, 1, 1], [], []>} : vector<8x128xf32>, vector<128x384xf32>, vector<8x384xf32> -> vector<8x384xf32>
    %102 = vector.extract_strided_slice %100 {offsets = [0, 0], sizes = [8, 128], strides = [1, 1]} : vector<8x384xf32> to vector<8x128xf32>
    %103 = vector.extract_strided_slice %101 {offsets = [0, 0], sizes = [8, 128], strides = [1, 1]} : vector<8x384xf32> to vector<8x128xf32>
    %104 = arith.addf %102, %103 : vector<8x128xf32>
    %105 = arith.negf %104 : vector<8x128xf32>
    %106 = math.exp %105 : vector<8x128xf32>
    %cst_24 = arith.constant 1.000000e+00 : f32
    %107 = vector.broadcast %cst_24 : f32 to vector<8x128xf32>
    %108 = arith.addf %107, %106 : vector<8x128xf32>
    %109 = arith.divf %107, %108 : vector<8x128xf32>
    %110 = vector.extract_strided_slice %100 {offsets = [0, 128], sizes = [8, 128], strides = [1, 1]} : vector<8x384xf32> to vector<8x128xf32>
    %111 = vector.extract_strided_slice %101 {offsets = [0, 128], sizes = [8, 128], strides = [1, 1]} : vector<8x384xf32> to vector<8x128xf32>
    %112 = arith.addf %110, %111 : vector<8x128xf32>
    %113 = arith.negf %112 : vector<8x128xf32>
    %114 = math.exp %113 : vector<8x128xf32>
    %cst_25 = arith.constant 1.000000e+00 : f32
    %115 = vector.broadcast %cst_25 : f32 to vector<8x128xf32>
    %116 = arith.addf %115, %114 : vector<8x128xf32>
    %117 = arith.divf %115, %116 : vector<8x128xf32>
    %118 = vector.extract_strided_slice %100 {offsets = [0, 256], sizes = [8, 128], strides = [1, 1]} : vector<8x384xf32> to vector<8x128xf32>
    %119 = vector.extract_strided_slice %101 {offsets = [0, 256], sizes = [8, 128], strides = [1, 1]} : vector<8x384xf32> to vector<8x128xf32>
    %120 = arith.addf %119, %3 : vector<8x128xf32>
    %121 = arith.mulf %109, %120 : vector<8x128xf32>
    %122 = arith.addf %118, %121 : vector<8x128xf32>
    %123 = math.tanh %122 : vector<8x128xf32>
    %cst_26 = arith.constant 1.000000e+00 : f32
    %124 = vector.broadcast %cst_26 : f32 to vector<8x128xf32>
    %125 = arith.subf %124, %117 : vector<8x128xf32>
    %126 = arith.mulf %125, %123 : vector<8x128xf32>
    %127 = arith.mulf %117, %97 : vector<8x128xf32>
    %128 = arith.addf %126, %127 : vector<8x128xf32>
    %c4_i32 = arith.constant 4 : i32
    %129 = arith.index_cast %c4_i32 : i32 to index
    %c0_27 = arith.constant 0 : index
    %c0_28 = arith.constant 0 : index
    %130 = vector.load %arg0[%129, %c0_27, %c0_28] : memref<8x8x384xf32, #tpu.memory_space<vmem>>, vector<1x8x384xf32>
    %131 = vector.shape_cast %130 : vector<1x8x384xf32> to vector<8x384xf32>
    %cst_29 = arith.constant dense<0.000000e+00> : vector<8x384xf32>
    %132 = tpu.matmul %128, %0, %cst_29 {dimension_numbers = #tpu.dot_dimension_numbers<[1], [0], [0], [1], [0, 0, 1, 1], [], []>} : vector<8x128xf32>, vector<128x384xf32>, vector<8x384xf32> -> vector<8x384xf32>
    %133 = vector.extract_strided_slice %131 {offsets = [0, 0], sizes = [8, 128], strides = [1, 1]} : vector<8x384xf32> to vector<8x128xf32>
    %134 = vector.extract_strided_slice %132 {offsets = [0, 0], sizes = [8, 128], strides = [1, 1]} : vector<8x384xf32> to vector<8x128xf32>
    %135 = arith.addf %133, %134 : vector<8x128xf32>
    %136 = arith.negf %135 : vector<8x128xf32>
    %137 = math.exp %136 : vector<8x128xf32>
    %cst_30 = arith.constant 1.000000e+00 : f32
    %138 = vector.broadcast %cst_30 : f32 to vector<8x128xf32>
    %139 = arith.addf %138, %137 : vector<8x128xf32>
    %140 = arith.divf %138, %139 : vector<8x128xf32>
    %141 = vector.extract_strided_slice %131 {offsets = [0, 128], sizes = [8, 128], strides = [1, 1]} : vector<8x384xf32> to vector<8x128xf32>
    %142 = vector.extract_strided_slice %132 {offsets = [0, 128], sizes = [8, 128], strides = [1, 1]} : vector<8x384xf32> to vector<8x128xf32>
    %143 = arith.addf %141, %142 : vector<8x128xf32>
    %144 = arith.negf %143 : vector<8x128xf32>
    %145 = math.exp %144 : vector<8x128xf32>
    %cst_31 = arith.constant 1.000000e+00 : f32
    %146 = vector.broadcast %cst_31 : f32 to vector<8x128xf32>
    %147 = arith.addf %146, %145 : vector<8x128xf32>
    %148 = arith.divf %146, %147 : vector<8x128xf32>
    %149 = vector.extract_strided_slice %131 {offsets = [0, 256], sizes = [8, 128], strides = [1, 1]} : vector<8x384xf32> to vector<8x128xf32>
    %150 = vector.extract_strided_slice %132 {offsets = [0, 256], sizes = [8, 128], strides = [1, 1]} : vector<8x384xf32> to vector<8x128xf32>
    %151 = arith.addf %150, %3 : vector<8x128xf32>
    %152 = arith.mulf %140, %151 : vector<8x128xf32>
    %153 = arith.addf %149, %152 : vector<8x128xf32>
    %154 = math.tanh %153 : vector<8x128xf32>
    %cst_32 = arith.constant 1.000000e+00 : f32
    %155 = vector.broadcast %cst_32 : f32 to vector<8x128xf32>
    %156 = arith.subf %155, %148 : vector<8x128xf32>
    %157 = arith.mulf %156, %154 : vector<8x128xf32>
    %158 = arith.mulf %148, %128 : vector<8x128xf32>
    %159 = arith.addf %157, %158 : vector<8x128xf32>
    %c5_i32 = arith.constant 5 : i32
    %160 = arith.index_cast %c5_i32 : i32 to index
    %c0_33 = arith.constant 0 : index
    %c0_34 = arith.constant 0 : index
    %161 = vector.load %arg0[%160, %c0_33, %c0_34] : memref<8x8x384xf32, #tpu.memory_space<vmem>>, vector<1x8x384xf32>
    %162 = vector.shape_cast %161 : vector<1x8x384xf32> to vector<8x384xf32>
    %cst_35 = arith.constant dense<0.000000e+00> : vector<8x384xf32>
    %163 = tpu.matmul %159, %0, %cst_35 {dimension_numbers = #tpu.dot_dimension_numbers<[1], [0], [0], [1], [0, 0, 1, 1], [], []>} : vector<8x128xf32>, vector<128x384xf32>, vector<8x384xf32> -> vector<8x384xf32>
    %164 = vector.extract_strided_slice %162 {offsets = [0, 0], sizes = [8, 128], strides = [1, 1]} : vector<8x384xf32> to vector<8x128xf32>
    %165 = vector.extract_strided_slice %163 {offsets = [0, 0], sizes = [8, 128], strides = [1, 1]} : vector<8x384xf32> to vector<8x128xf32>
    %166 = arith.addf %164, %165 : vector<8x128xf32>
    %167 = arith.negf %166 : vector<8x128xf32>
    %168 = math.exp %167 : vector<8x128xf32>
    %cst_36 = arith.constant 1.000000e+00 : f32
    %169 = vector.broadcast %cst_36 : f32 to vector<8x128xf32>
    %170 = arith.addf %169, %168 : vector<8x128xf32>
    %171 = arith.divf %169, %170 : vector<8x128xf32>
    %172 = vector.extract_strided_slice %162 {offsets = [0, 128], sizes = [8, 128], strides = [1, 1]} : vector<8x384xf32> to vector<8x128xf32>
    %173 = vector.extract_strided_slice %163 {offsets = [0, 128], sizes = [8, 128], strides = [1, 1]} : vector<8x384xf32> to vector<8x128xf32>
    %174 = arith.addf %172, %173 : vector<8x128xf32>
    %175 = arith.negf %174 : vector<8x128xf32>
    %176 = math.exp %175 : vector<8x128xf32>
    %cst_37 = arith.constant 1.000000e+00 : f32
    %177 = vector.broadcast %cst_37 : f32 to vector<8x128xf32>
    %178 = arith.addf %177, %176 : vector<8x128xf32>
    %179 = arith.divf %177, %178 : vector<8x128xf32>
    %180 = vector.extract_strided_slice %162 {offsets = [0, 256], sizes = [8, 128], strides = [1, 1]} : vector<8x384xf32> to vector<8x128xf32>
    %181 = vector.extract_strided_slice %163 {offsets = [0, 256], sizes = [8, 128], strides = [1, 1]} : vector<8x384xf32> to vector<8x128xf32>
    %182 = arith.addf %181, %3 : vector<8x128xf32>
    %183 = arith.mulf %171, %182 : vector<8x128xf32>
    %184 = arith.addf %180, %183 : vector<8x128xf32>
    %185 = math.tanh %184 : vector<8x128xf32>
    %cst_38 = arith.constant 1.000000e+00 : f32
    %186 = vector.broadcast %cst_38 : f32 to vector<8x128xf32>
    %187 = arith.subf %186, %179 : vector<8x128xf32>
    %188 = arith.mulf %187, %185 : vector<8x128xf32>
    %189 = arith.mulf %179, %159 : vector<8x128xf32>
    %190 = arith.addf %188, %189 : vector<8x128xf32>
    %c6_i32 = arith.constant 6 : i32
    %191 = arith.index_cast %c6_i32 : i32 to index
    %c0_39 = arith.constant 0 : index
    %c0_40 = arith.constant 0 : index
    %192 = vector.load %arg0[%191, %c0_39, %c0_40] : memref<8x8x384xf32, #tpu.memory_space<vmem>>, vector<1x8x384xf32>
    %193 = vector.shape_cast %192 : vector<1x8x384xf32> to vector<8x384xf32>
    %cst_41 = arith.constant dense<0.000000e+00> : vector<8x384xf32>
    %194 = tpu.matmul %190, %0, %cst_41 {dimension_numbers = #tpu.dot_dimension_numbers<[1], [0], [0], [1], [0, 0, 1, 1], [], []>} : vector<8x128xf32>, vector<128x384xf32>, vector<8x384xf32> -> vector<8x384xf32>
    %195 = vector.extract_strided_slice %193 {offsets = [0, 0], sizes = [8, 128], strides = [1, 1]} : vector<8x384xf32> to vector<8x128xf32>
    %196 = vector.extract_strided_slice %194 {offsets = [0, 0], sizes = [8, 128], strides = [1, 1]} : vector<8x384xf32> to vector<8x128xf32>
    %197 = arith.addf %195, %196 : vector<8x128xf32>
    %198 = arith.negf %197 : vector<8x128xf32>
    %199 = math.exp %198 : vector<8x128xf32>
    %cst_42 = arith.constant 1.000000e+00 : f32
    %200 = vector.broadcast %cst_42 : f32 to vector<8x128xf32>
    %201 = arith.addf %200, %199 : vector<8x128xf32>
    %202 = arith.divf %200, %201 : vector<8x128xf32>
    %203 = vector.extract_strided_slice %193 {offsets = [0, 128], sizes = [8, 128], strides = [1, 1]} : vector<8x384xf32> to vector<8x128xf32>
    %204 = vector.extract_strided_slice %194 {offsets = [0, 128], sizes = [8, 128], strides = [1, 1]} : vector<8x384xf32> to vector<8x128xf32>
    %205 = arith.addf %203, %204 : vector<8x128xf32>
    %206 = arith.negf %205 : vector<8x128xf32>
    %207 = math.exp %206 : vector<8x128xf32>
    %cst_43 = arith.constant 1.000000e+00 : f32
    %208 = vector.broadcast %cst_43 : f32 to vector<8x128xf32>
    %209 = arith.addf %208, %207 : vector<8x128xf32>
    %210 = arith.divf %208, %209 : vector<8x128xf32>
    %211 = vector.extract_strided_slice %193 {offsets = [0, 256], sizes = [8, 128], strides = [1, 1]} : vector<8x384xf32> to vector<8x128xf32>
    %212 = vector.extract_strided_slice %194 {offsets = [0, 256], sizes = [8, 128], strides = [1, 1]} : vector<8x384xf32> to vector<8x128xf32>
    %213 = arith.addf %212, %3 : vector<8x128xf32>
    %214 = arith.mulf %202, %213 : vector<8x128xf32>
    %215 = arith.addf %211, %214 : vector<8x128xf32>
    %216 = math.tanh %215 : vector<8x128xf32>
    %cst_44 = arith.constant 1.000000e+00 : f32
    %217 = vector.broadcast %cst_44 : f32 to vector<8x128xf32>
    %218 = arith.subf %217, %210 : vector<8x128xf32>
    %219 = arith.mulf %218, %216 : vector<8x128xf32>
    %220 = arith.mulf %210, %190 : vector<8x128xf32>
    %221 = arith.addf %219, %220 : vector<8x128xf32>
    %c7_i32 = arith.constant 7 : i32
    %222 = arith.index_cast %c7_i32 : i32 to index
    %c0_45 = arith.constant 0 : index
    %c0_46 = arith.constant 0 : index
    %223 = vector.load %arg0[%222, %c0_45, %c0_46] : memref<8x8x384xf32, #tpu.memory_space<vmem>>, vector<1x8x384xf32>
    %224 = vector.shape_cast %223 : vector<1x8x384xf32> to vector<8x384xf32>
    %cst_47 = arith.constant dense<0.000000e+00> : vector<8x384xf32>
    %225 = tpu.matmul %221, %0, %cst_47 {dimension_numbers = #tpu.dot_dimension_numbers<[1], [0], [0], [1], [0, 0, 1, 1], [], []>} : vector<8x128xf32>, vector<128x384xf32>, vector<8x384xf32> -> vector<8x384xf32>
    %226 = vector.extract_strided_slice %224 {offsets = [0, 0], sizes = [8, 128], strides = [1, 1]} : vector<8x384xf32> to vector<8x128xf32>
    %227 = vector.extract_strided_slice %225 {offsets = [0, 0], sizes = [8, 128], strides = [1, 1]} : vector<8x384xf32> to vector<8x128xf32>
    %228 = arith.addf %226, %227 : vector<8x128xf32>
    %229 = arith.negf %228 : vector<8x128xf32>
    %230 = math.exp %229 : vector<8x128xf32>
    %cst_48 = arith.constant 1.000000e+00 : f32
    %231 = vector.broadcast %cst_48 : f32 to vector<8x128xf32>
    %232 = arith.addf %231, %230 : vector<8x128xf32>
    %233 = arith.divf %231, %232 : vector<8x128xf32>
    %234 = vector.extract_strided_slice %224 {offsets = [0, 128], sizes = [8, 128], strides = [1, 1]} : vector<8x384xf32> to vector<8x128xf32>
    %235 = vector.extract_strided_slice %225 {offsets = [0, 128], sizes = [8, 128], strides = [1, 1]} : vector<8x384xf32> to vector<8x128xf32>
    %236 = arith.addf %234, %235 : vector<8x128xf32>
    %237 = arith.negf %236 : vector<8x128xf32>
    %238 = math.exp %237 : vector<8x128xf32>
    %cst_49 = arith.constant 1.000000e+00 : f32
    %239 = vector.broadcast %cst_49 : f32 to vector<8x128xf32>
    %240 = arith.addf %239, %238 : vector<8x128xf32>
    %241 = arith.divf %239, %240 : vector<8x128xf32>
    %242 = vector.extract_strided_slice %224 {offsets = [0, 256], sizes = [8, 128], strides = [1, 1]} : vector<8x384xf32> to vector<8x128xf32>
    %243 = vector.extract_strided_slice %225 {offsets = [0, 256], sizes = [8, 128], strides = [1, 1]} : vector<8x384xf32> to vector<8x128xf32>
    %244 = arith.addf %243, %3 : vector<8x128xf32>
    %245 = arith.mulf %233, %244 : vector<8x128xf32>
    %246 = arith.addf %242, %245 : vector<8x128xf32>
    %247 = math.tanh %246 : vector<8x128xf32>
    %cst_50 = arith.constant 1.000000e+00 : f32
    %248 = vector.broadcast %cst_50 : f32 to vector<8x128xf32>
    %249 = arith.subf %248, %241 : vector<8x128xf32>
    %250 = arith.mulf %249, %247 : vector<8x128xf32>
    %251 = arith.mulf %241, %221 : vector<8x128xf32>
    %252 = arith.addf %250, %251 : vector<8x128xf32>
    %c8_i32 = arith.constant 8 : i32
    %c0_51 = arith.constant 0 : index
    %c0_52 = arith.constant 0 : index
    %253 = vector.load %arg3[%c0_51, %c0_52] : memref<128x128xf32, #tpu.memory_space<vmem>>, vector<128x128xf32>
    %cst_53 = arith.constant dense<0.000000e+00> : vector<8x128xf32>
    %254 = tpu.matmul %252, %253, %cst_53 {dimension_numbers = #tpu.dot_dimension_numbers<[1], [0], [0], [1], [0, 0, 1, 1], [], []>} : vector<8x128xf32>, vector<128x128xf32>, vector<8x128xf32> -> vector<8x128xf32>
    %c0_54 = arith.constant 0 : index
    %c0_55 = arith.constant 0 : index
    %255 = vector.load %arg4[%c0_54, %c0_55] : memref<1x128xf32, #tpu.memory_space<vmem>>, vector<1x128xf32>
    %256 = vector.broadcast %255 : vector<1x128xf32> to vector<8x128xf32>
    %257 = arith.addf %254, %256 : vector<8x128xf32>
    %c0_56 = arith.constant 0 : index
    %c0_57 = arith.constant 0 : index
    %258 = vector.load %arg5[%c0_56, %c0_57] : memref<8x128xf32, #tpu.memory_space<vmem>>, vector<8x128xf32>
    tpu.vector_store %arg5[%c0_56, %c0_57], %257 {strides = array<i32>} : memref<8x128xf32, #tpu.memory_space<vmem>>, vector<8x128xf32>,
    return
  }
}

</mosaic_0001>

<llo_original>
// kernel: gru_net_forward.1
$region0: #{gru_net_forward.1}
  #allocation0 [shape = 'u32[]', space=smem, size = 0x4, offset = 0x4, fixed_abs, tag = 'smem constant byte address 0x4 - core index']
  #allocation1 [shape = 'u32[72,128]{1,0:T(1,128)}', space=vmem, size = 0x9000, scoped, tag = 'internal scratch']
  %s0 = inlined_call_operand.vmem [shape: f32[8,8,384], index: 0, kind: input, shape index: {}]
  %s1 = inlined_call_operand.vmem [shape: f32[128,384], index: 1, kind: input, shape index: {}]
  %s2 = inlined_call_operand.vmem [shape: f32[1,128], index: 2, kind: input, shape index: {}]
  %s3 = inlined_call_operand.vmem [shape: f32[128,128], index: 3, kind: input, shape index: {}]
  %s4 = inlined_call_operand.vmem [shape: f32[1,128], index: 4, kind: input, shape index: {}]
  %s5 = inlined_call_operand.vmem [shape: f32[8,128], index: 5, kind: output, shape index: {}]
  %s6 = sld [smem:[#allocation0]]
  $region30: #{gru_net_forward.1} parent=0
    _
  %s8 = ssub.s32 1, %s6
  %s9 = scalar_select 0, %s8, %s6
  // Predicated region
  $region2: #{gru_net_forward.1} parent=0 // pred_check
    _
  $region3: #{gru_net_forward.1} parent=0 // pred_check_branch
    %11 = sbr.rel (0) target = $region5
  $region4: #{gru_net_forward.1} parent=0 // pred_region
    _
  $region5: #{gru_net_forward.1} parent=0 // pred_fallthru
    _
  // Predicated region
  $region6: #{gru_net_forward.1} parent=0 // pred_check
    _
  $region7: #{gru_net_forward.1} parent=0 // pred_check_branch
    %13 = sbr.rel (0) target = $region9
  $region8: #{gru_net_forward.1} parent=0 // pred_region
    _
  $region9: #{gru_net_forward.1} parent=0 // pred_fallthru
    _
  // Predicated region
  $region10: #{gru_net_forward.1} parent=0 // pred_check
    _
  $region11: #{gru_net_forward.1} parent=0 // pred_check_branch
    %15 = sbr.rel (0) target = $region13
  $region12: #{gru_net_forward.1} parent=0 // pred_region
    _
  $region13: #{gru_net_forward.1} parent=0 // pred_fallthru
    _
  // Predicated region
  $region14: #{gru_net_forward.1} parent=0 // pred_check
    _
  $region15: #{gru_net_forward.1} parent=0 // pred_check_branch
    %17 = sbr.rel (0) target = $region17
  $region16: #{gru_net_forward.1} parent=0 // pred_region
    _
  $region17: #{gru_net_forward.1} parent=0 // pred_fallthru
    _
  // Predicated region
  $region18: #{gru_net_forward.1} parent=0 // pred_check
    _
  $region19: #{gru_net_forward.1} parent=0 // pred_check_branch
    %19 = sbr.rel (0) target = $region21
  $region20: #{gru_net_forward.1} parent=0 // pred_region
    _
  $region21: #{gru_net_forward.1} parent=0 // pred_fallthru
    _
  %v20 = vld [vmem:[%s1] sm:$0xff]
  %v21 = vld [vmem:[%s1 + $0x8] sm:$0xff]
  %v22 = vld [vmem:[%s1 + $0x10] sm:$0xff]
  %v23 = vld [vmem:[%s1 + $0x18] sm:$0xff]
  %v24 = vld [vmem:[%s1 + $0x20] sm:$0xff]
  %v25 = vld [vmem:[%s1 + $0x28] sm:$0xff]
  %v26 = vld [vmem:[%s1 + $0x30] sm:$0xff]
  %v27 = vld [vmem:[%s1 + $0x38] sm:$0xff]
  %v28 = vld [vmem:[%s1 + $0x40] sm:$0xff]
  %v29 = vld [vmem:[%s1 + $0x48] sm:$0xff]
  %v30 = vld [vmem:[%s1 + $0x50] sm:$0xff]
  %v31 = vld [vmem:[%s1 + $0x58] sm:$0xff]
  %v32 = vld [vmem:[%s1 + $0x60] sm:$0xff]
  %v33 = vld [vmem:[%s1 + $0x68] sm:$0xff]
  %v34 = vld [vmem:[%s1 + $0x70] sm:$0xff]
  %v35 = vld [vmem:[%s1 + $0x78] sm:$0xff]
  %v36 = vld [vmem:[%s1 + $0x80] sm:$0xff]
  %v37 = vld [vmem:[%s1 + $0x88] sm:$0xff]
  %v38 = vld [vmem:[%s1 + $0x90] sm:$0xff]
  %v39 = vld [vmem:[%s1 + $0x98] sm:$0xff]
  %v40 = vld [vmem:[%s1 + $0xa0] sm:$0xff]
  %v41 = vld [vmem:[%s1 + $0xa8] sm:$0xff]
  %v42 = vld [vmem:[%s1 + $0xb0] sm:$0xff]
  %v43 = vld [vmem:[%s1 + $0xb8] sm:$0xff]
  %v44 = vld [vmem:[%s1 + $0xc0] sm:$0xff]
  %v45 = vld [vmem:[%s1 + $0xc8] sm:$0xff]
  %v46 = vld [vmem:[%s1 + $0xd0] sm:$0xff]
  %v47 = vld [vmem:[%s1 + $0xd8] sm:$0xff]
  %v48 = vld [vmem:[%s1 + $0xe0] sm:$0xff]
  %v49 = vld [vmem:[%s1 + $0xe8] sm:$0xff]
  %v50 = vld [vmem:[%s1 + $0xf0] sm:$0xff]
  %v51 = vld [vmem:[%s1 + $0xf8] sm:$0xff]
  %v52 = vld [vmem:[%s1 + $0x100] sm:$0xff]
  %v53 = vld [vmem:[%s1 + $0x108] sm:$0xff]
  %v54 = vld [vmem:[%s1 + $0x110] sm:$0xff]
  %v55 = vld [vmem:[%s1 + $0x118] sm:$0xff]
  %v56 = vld [vmem:[%s1 + $0x120] sm:$0xff]
  %v57 = vld [vmem:[%s1 + $0x128] sm:$0xff]
  %v58 = vld [vmem:[%s1 + $0x130] sm:$0xff]
  %v59 = vld [vmem:[%s1 + $0x138] sm:$0xff]
  %v60 = vld [vmem:[%s1 + $0x140] sm:$0xff]
  %v61 = vld [vmem:[%s1 + $0x148] sm:$0xff]
  %v62 = vld [vmem:[%s1 + $0x150] sm:$0xff]
  %v63 = vld [vmem:[%s1 + $0x158] sm:$0xff]
  %v64 = vld [vmem:[%s1 + $0x160] sm:$0xff]
  %v65 = vld [vmem:[%s1 + $0x168] sm:$0xff]
  %v66 = vld [vmem:[%s1 + $0x170] sm:$0xff]
  %v67 = vld [vmem:[%s1 + $0x178] sm:$0xff]
  %v68 = vld [vmem:[%s2] sm:$0x1]
  %v70 = vperm.slane %v68, 0
  %v72 = vld [vmem:[%s0] sm:$0xff]
  %v73 = vld [vmem:[%s0 + $0x8] sm:$0xff]
  %v74 = vld [vmem:[%s0 + $0x10] sm:$0xff]
  %75 = vmatpush.msra.mxu0 %v65
  %76 = vmatpush.msra.mxu0 %v62
  %77 = vmatpush.msra.mxu0 %v59
  %78 = vmatpush.msra.mxu0 %v56
  %79 = vmatpush.msra.mxu0 %v53
  %80 = vmatpush.msra.mxu0 %v50
  %81 = vmatpush.msra.mxu0 %v47
  %82 = vmatpush.msra.mxu0 %v44
  %83 = vmatpush.msra.mxu0 %v41
  %84 = vmatpush.msra.mxu0 %v38
  %85 = vmatpush.msra.mxu0 %v35
  %86 = vmatpush.msra.mxu0 %v32
  %87 = vmatpush.msra.mxu0 %v29
  %88 = vmatpush.msra.mxu0 %v26
  %89 = vmatpush.msra.mxu0 %v23
  %90 = vmatpush.msra.mxu0 %v20
  %91 = vmatmul.f32.gmra.mxu0 0.0
  %v92 = vpop.f32.mrf.mxu0
  %v93 = vadd.f32 0.0, %v92
  %94 = vdwg.mxu0
  %95 = vmatpush.msra.mxu0 %v66
  %96 = vmatpush.msra.mxu0 %v63
  %97 = vmatpush.msra.mxu0 %v60
  %98 = vmatpush.msra.mxu0 %v57
  %99 = vmatpush.msra.mxu0 %v54
  %100 = vmatpush.msra.mxu0 %v51
  %101 = vmatpush.msra.mxu0 %v48
  %102 = vmatpush.msra.mxu0 %v45
  %103 = vmatpush.msra.mxu0 %v42
  %104 = vmatpush.msra.mxu0 %v39
  %105 = vmatpush.msra.mxu0 %v36
  %106 = vmatpush.msra.mxu0 %v33
  %107 = vmatpush.msra.mxu0 %v30
  %108 = vmatpush.msra.mxu0 %v27
  %109 = vmatpush.msra.mxu0 %v24
  %110 = vmatpush.msra.mxu0 %v21
  %111 = vmatmul.f32.gmra.mxu0 0.0
  %v112 = vpop.f32.mrf.mxu0
  %v113 = vadd.f32 0.0, %v112
  %114 = vdwg.mxu0
  %115 = vmatpush.msra.mxu0 %v67
  %116 = vmatpush.msra.mxu0 %v64
  %117 = vmatpush.msra.mxu0 %v61
  %118 = vmatpush.msra.mxu0 %v58
  %119 = vmatpush.msra.mxu0 %v55
  %120 = vmatpush.msra.mxu0 %v52
  %121 = vmatpush.msra.mxu0 %v49
  %122 = vmatpush.msra.mxu0 %v46
  %123 = vmatpush.msra.mxu0 %v43
  %124 = vmatpush.msra.mxu0 %v40
  %125 = vmatpush.msra.mxu0 %v37
  %126 = vmatpush.msra.mxu0 %v34
  %127 = vmatpush.msra.mxu0 %v31
  %128 = vmatpush.msra.mxu0 %v28
  %129 = vmatpush.msra.mxu0 %v25
  %130 = vmatpush.msra.mxu0 %v22
  %131 = vmatmul.f32.gmra.mxu0 0.0
  %v132 = vpop.f32.mrf.mxu0
  %v133 = vadd.f32 0.0, %v132
  %134 = vdwg.mxu0
  %v135 = vadd.f32 %v72, %v93
  %v136 = vxor.u32 %v135, 2147483648
  %v137 = vmul.f32 %v136, 1.442695
  %v138 = vpow.pop %v137
  %v139 = vadd.f32 %v138, 1.0
  %v140 = vrcp.pop %v139
  %v141 = vmul.f32 %v139, %v140
  %v142 = vsub.f32 1.0, %v141
  %v143 = vmul.f32 %v140, %v142
  %v144 = vadd.f32 %v140, %v143
  %vm145 = vweird.f32 %v139
  %vm146 = vweird.f32 %v140
  %vm147 = vmor %vm145, %vm146
  %v148 = vsel %vm147, %v140, %v144
  %v149 = vand.u32 2147483647, %v139
  %vm150 = vcmp.eq.f32.partialorder %v149, 8.507059e+37
  %v151 = vand.u32 %v139, 2147483648
  %v152 = vor.u32 1.1754944e-38, %v151
  %v153 = vsel %vm150, %v152, %v148
  %v154 = vmul.f32 1.0, %v153
  %v155 = vadd.f32 %v73, %v113
  %v156 = vxor.u32 %v155, 2147483648
  %v157 = vmul.f32 %v156, 1.442695
  %v158 = vpow.pop %v157
  %v159 = vadd.f32 %v158, 1.0
  %v160 = vrcp.pop %v159
  %v161 = vmul.f32 %v159, %v160
  %v162 = vsub.f32 1.0, %v161
  %v163 = vmul.f32 %v160, %v162
  %v164 = vadd.f32 %v160, %v163
  %vm165 = vweird.f32 %v159
  %vm166 = vweird.f32 %v160
  %vm167 = vmor %vm165, %vm166
  %v168 = vsel %vm167, %v160, %v164
  %v169 = vand.u32 2147483647, %v159
  %vm170 = vcmp.eq.f32.partialorder %v169, 8.507059e+37
  %v171 = vand.u32 %v159, 2147483648
  %v172 = vor.u32 1.1754944e-38, %v171
  %v173 = vsel %vm170, %v172, %v168
  %v174 = vmul.f32 1.0, %v173
  %v175 = vadd.f32 %v133, %v70
  %v176 = vmul.f32 %v154, %v175
  %v177 = vadd.f32 %v74, %v176
  %v178 = vtanh.pop %v177
  %v179 = vsub.f32 1.0, %v174
  %v180 = vmul.f32 %v179, %v178
  %v181 = vmul.f32 %v174, 0.0
  %v182 = vadd.f32 %v180, %v181
  %s183 = scalar_lea.vmem %s0, 24
  %v184 = vld [vmem:[%s183] sm:$0xff]
  %v185 = vld [vmem:[%s183 + $0x8] sm:$0xff]
  %v186 = vld [vmem:[%s183 + $0x10] sm:$0xff]
  %187 = vmatpush.msra.mxu0 %v65
  %188 = vmatpush.msra.mxu0 %v62
  %189 = vmatpush.msra.mxu0 %v59
  %190 = vmatpush.msra.mxu0 %v56
  %191 = vmatpush.msra.mxu0 %v53
  %192 = vmatpush.msra.mxu0 %v50
  %193 = vmatpush.msra.mxu0 %v47
  %194 = vmatpush.msra.mxu0 %v44
  %195 = vmatpush.msra.mxu0 %v41
  %196 = vmatpush.msra.mxu0 %v38
  %197 = vmatpush.msra.mxu0 %v35
  %198 = vmatpush.msra.mxu0 %v32
  %199 = vmatpush.msra.mxu0 %v29
  %200 = vmatpush.msra.mxu0 %v26
  %201 = vmatpush.msra.mxu0 %v23
  %202 = vmatpush.msra.mxu0 %v20
  %203 = vmatmul.f32.gmra.mxu0 %v182
  %v204 = vpop.f32.mrf.mxu0
  %v205 = vadd.f32 0.0, %v204
  %206 = vdwg.mxu0
  %207 = vmatpush.msra.mxu0 %v66
  %208 = vmatpush.msra.mxu0 %v63
  %209 = vmatpush.msra.mxu0 %v60
  %210 = vmatpush.msra.mxu0 %v57
  %211 = vmatpush.msra.mxu0 %v54
  %212 = vmatpush.msra.mxu0 %v51
  %213 = vmatpush.msra.mxu0 %v48
  %214 = vmatpush.msra.mxu0 %v45
  %215 = vmatpush.msra.mxu0 %v42
  %216 = vmatpush.msra.mxu0 %v39
  %217 = vmatpush.msra.mxu0 %v36
  %218 = vmatpush.msra.mxu0 %v33
  %219 = vmatpush.msra.mxu0 %v30
  %220 = vmatpush.msra.mxu0 %v27
  %221 = vmatpush.msra.mxu0 %v24
  %222 = vmatpush.msra.mxu0 %v21
  %223 = vmatmul.f32.gmra.mxu0 %v182
  %v224 = vpop.f32.mrf.mxu0
  %v225 = vadd.f32 0.0, %v224
  %226 = vdwg.mxu0
  %227 = vmatpush.msra.mxu0 %v67
  %228 = vmatpush.msra.mxu0 %v64
  %229 = vmatpush.msra.mxu0 %v61
  %230 = vmatpush.msra.mxu0 %v58
  %231 = vmatpush.msra.mxu0 %v55
  %232 = vmatpush.msra.mxu0 %v52
  %233 = vmatpush.msra.mxu0 %v49
  %234 = vmatpush.msra.mxu0 %v46
  %235 = vmatpush.msra.mxu0 %v43
  %236 = vmatpush.msra.mxu0 %v40
  %237 = vmatpush.msra.mxu0 %v37
  %238 = vmatpush.msra.mxu0 %v34
  %239 = vmatpush.msra.mxu0 %v31
  %240 = vmatpush.msra.mxu0 %v28
  %241 = vmatpush.msra.mxu0 %v25
  %242 = vmatpush.msra.mxu0 %v22
  %243 = vmatmul.f32.gmra.mxu0 %v182
  %v244 = vpop.f32.mrf.mxu0
  %v245 = vadd.f32 0.0, %v244
  %246 = vdwg.mxu0
  %v247 = vadd.f32 %v184, %v205
  %v248 = vxor.u32 %v247, 2147483648
  %v249 = vmul.f32 %v248, 1.442695
  %v250 = vpow.pop %v249
  %v251 = vadd.f32 %v250, 1.0
  %v252 = vrcp.pop %v251
  %v253 = vmul.f32 %v251, %v252
  %v254 = vsub.f32 1.0, %v253
  %v255 = vmul.f32 %v252, %v254
  %v256 = vadd.f32 %v252, %v255
  %vm257 = vweird.f32 %v251
  %vm258 = vweird.f32 %v252
  %vm259 = vmor %vm257, %vm258
  %v260 = vsel %vm259, %v252, %v256
  %v261 = vand.u32 2147483647, %v251
  %vm262 = vcmp.eq.f32.partialorder %v261, 8.507059e+37
  %v263 = vand.u32 %v251, 2147483648
  %v264 = vor.u32 1.1754944e-38, %v263
  %v265 = vsel %vm262, %v264, %v260
  %v266 = vmul.f32 1.0, %v265
  %v267 = vadd.f32 %v185, %v225
  %v268 = vxor.u32 %v267, 2147483648
  %v269 = vmul.f32 %v268, 1.442695
  %v270 = vpow.pop %v269
  %v271 = vadd.f32 %v270, 1.0
  %v272 = vrcp.pop %v271
  %v273 = vmul.f32 %v271, %v272
  %v274 = vsub.f32 1.0, %v273
  %v275 = vmul.f32 %v272, %v274
  %v276 = vadd.f32 %v272, %v275
  %vm277 = vweird.f32 %v271
  %vm278 = vweird.f32 %v272
  %vm279 = vmor %vm277, %vm278
  %v280 = vsel %vm279, %v272, %v276
  %v281 = vand.u32 2147483647, %v271
  %vm282 = vcmp.eq.f32.partialorder %v281, 8.507059e+37
  %v283 = vand.u32 %v271, 2147483648
  %v284 = vor.u32 1.1754944e-38, %v283
  %v285 = vsel %vm282, %v284, %v280
  %v286 = vmul.f32 1.0, %v285
  %v287 = vadd.f32 %v245, %v70
  %v288 = vmul.f32 %v266, %v287
  %v289 = vadd.f32 %v186, %v288
  %v290 = vtanh.pop %v289
  %v291 = vsub.f32 1.0, %v286
  %v292 = vmul.f32 %v291, %v290
  %v293 = vmul.f32 %v286, %v182
  %v294 = vadd.f32 %v292, %v293
  %s295 = scalar_lea.vmem %s0, 48
  %v296 = vld [vmem:[%s295] sm:$0xff]
  %v297 = vld [vmem:[%s295 + $0x8] sm:$0xff]
  %v298 = vld [vmem:[%s295 + $0x10] sm:$0xff]
  %299 = vmatpush.msra.mxu0 %v65
  %300 = vmatpush.msra.mxu0 %v62
  %301 = vmatpush.msra.mxu0 %v59
  %302 = vmatpush.msra.mxu0 %v56
  %303 = vmatpush.msra.mxu0 %v53
  %304 = vmatpush.msra.mxu0 %v50
  %305 = vmatpush.msra.mxu0 %v47
  %306 = vmatpush.msra.mxu0 %v44
  %307 = vmatpush.msra.mxu0 %v41
  %308 = vmatpush.msra.mxu0 %v38
  %309 = vmatpush.msra.mxu0 %v35
  %310 = vmatpush.msra.mxu0 %v32
  %311 = vmatpush.msra.mxu0 %v29
  %312 = vmatpush.msra.mxu0 %v26
  %313 = vmatpush.msra.mxu0 %v23
  %314 = vmatpush.msra.mxu0 %v20
  %315 = vmatmul.f32.gmra.mxu0 %v294
  %v316 = vpop.f32.mrf.mxu0
  %v317 = vadd.f32 0.0, %v316
  %318 = vdwg.mxu0
  %319 = vmatpush.msra.mxu0 %v66
  %320 = vmatpush.msra.mxu0 %v63
  %321 = vmatpush.msra.mxu0 %v60
  %322 = vmatpush.msra.mxu0 %v57
  %323 = vmatpush.msra.mxu0 %v54
  %324 = vmatpush.msra.mxu0 %v51
  %325 = vmatpush.msra.mxu0 %v48
  %326 = vmatpush.msra.mxu0 %v45
  %327 = vmatpush.msra.mxu0 %v42
  %328 = vmatpush.msra.mxu0 %v39
  %329 = vmatpush.msra.mxu0 %v36
  %330 = vmatpush.msra.mxu0 %v33
  %331 = vmatpush.msra.mxu0 %v30
  %332 = vmatpush.msra.mxu0 %v27
  %333 = vmatpush.msra.mxu0 %v24
  %334 = vmatpush.msra.mxu0 %v21
  %335 = vmatmul.f32.gmra.mxu0 %v294
  %v336 = vpop.f32.mrf.mxu0
  %v337 = vadd.f32 0.0, %v336
  %338 = vdwg.mxu0
  %339 = vmatpush.msra.mxu0 %v67
  %340 = vmatpush.msra.mxu0 %v64
  %341 = vmatpush.msra.mxu0 %v61
  %342 = vmatpush.msra.mxu0 %v58
  %343 = vmatpush.msra.mxu0 %v55
  %344 = vmatpush.msra.mxu0 %v52
  %345 = vmatpush.msra.mxu0 %v49
  %346 = vmatpush.msra.mxu0 %v46
  %347 = vmatpush.msra.mxu0 %v43
  %348 = vmatpush.msra.mxu0 %v40
  %349 = vmatpush.msra.mxu0 %v37
  %350 = vmatpush.msra.mxu0 %v34
  %351 = vmatpush.msra.mxu0 %v31
  %352 = vmatpush.msra.mxu0 %v28
  %353 = vmatpush.msra.mxu0 %v25
  %354 = vmatpush.msra.mxu0 %v22
  %355 = vmatmul.f32.gmra.mxu0 %v294
  %v356 = vpop.f32.mrf.mxu0
  %v357 = vadd.f32 0.0, %v356
  %358 = vdwg.mxu0
  %v359 = vadd.f32 %v296, %v317
  %v360 = vxor.u32 %v359, 2147483648
  %v361 = vmul.f32 %v360, 1.442695
  %v362 = vpow.pop %v361
  %v363 = vadd.f32 %v362, 1.0
  %v364 = vrcp.pop %v363
  %v365 = vmul.f32 %v363, %v364
  %v366 = vsub.f32 1.0, %v365
  %v367 = vmul.f32 %v364, %v366
  %v368 = vadd.f32 %v364, %v367
  %vm369 = vweird.f32 %v363
  %vm370 = vweird.f32 %v364
  %vm371 = vmor %vm369, %vm370
  %v372 = vsel %vm371, %v364, %v368
  %v373 = vand.u32 2147483647, %v363
  %vm374 = vcmp.eq.f32.partialorder %v373, 8.507059e+37
  %v375 = vand.u32 %v363, 2147483648
  %v376 = vor.u32 1.1754944e-38, %v375
  %v377 = vsel %vm374, %v376, %v372
  %v378 = vmul.f32 1.0, %v377
  %v379 = vadd.f32 %v297, %v337
  %v380 = vxor.u32 %v379, 2147483648
  %v381 = vmul.f32 %v380, 1.442695
  %v382 = vpow.pop %v381
  %v383 = vadd.f32 %v382, 1.0
  %v384 = vrcp.pop %v383
  %v385 = vmul.f32 %v383, %v384
  %v386 = vsub.f32 1.0, %v385
  %v387 = vmul.f32 %v384, %v386
  %v388 = vadd.f32 %v384, %v387
  %vm389 = vweird.f32 %v383
  %vm390 = vweird.f32 %v384
  %vm391 = vmor %vm389, %vm390
  %v392 = vsel %vm391, %v384, %v388
  %v393 = vand.u32 2147483647, %v383
  %vm394 = vcmp.eq.f32.partialorder %v393, 8.507059e+37
  %v395 = vand.u32 %v383, 2147483648
  %v396 = vor.u32 1.1754944e-38, %v395
  %v397 = vsel %vm394, %v396, %v392
  %v398 = vmul.f32 1.0, %v397
  %v399 = vadd.f32 %v357, %v70
  %v400 = vmul.f32 %v378, %v399
  %v401 = vadd.f32 %v298, %v400
  %v402 = vtanh.pop %v401
  %v403 = vsub.f32 1.0, %v398
  %v404 = vmul.f32 %v403, %v402
  %v405 = vmul.f32 %v398, %v294
  %v406 = vadd.f32 %v404, %v405
  %s407 = scalar_lea.vmem %s0, 72
  %v408 = vld [vmem:[%s407] sm:$0xff]
  %v409 = vld [vmem:[%s407 + $0x8] sm:$0xff]
  %v410 = vld [vmem:[%s407 + $0x10] sm:$0xff]
  %411 = vmatpush.msra.mxu0 %v65
  %412 = vmatpush.msra.mxu0 %v62
  %413 = vmatpush.msra.mxu0 %v59
  %414 = vmatpush.msra.mxu0 %v56
  %415 = vmatpush.msra.mxu0 %v53
  %416 = vmatpush.msra.mxu0 %v50
  %417 = vmatpush.msra.mxu0 %v47
  %418 = vmatpush.msra.mxu0 %v44
  %419 = vmatpush.msra.mxu0 %v41
  %420 = vmatpush.msra.mxu0 %v38
  %421 = vmatpush.msra.mxu0 %v35
  %422 = vmatpush.msra.mxu0 %v32
  %423 = vmatpush.msra.mxu0 %v29
  %424 = vmatpush.msra.mxu0 %v26
  %425 = vmatpush.msra.mxu0 %v23
  %426 = vmatpush.msra.mxu0 %v20
  %427 = vmatmul.f32.gmra.mxu0 %v406
  %v428 = vpop.f32.mrf.mxu0
  %v429 = vadd.f32 0.0, %v428
  %430 = vdwg.mxu0
  %431 = vmatpush.msra.mxu0 %v66
  %432 = vmatpush.msra.mxu0 %v63
  %433 = vmatpush.msra.mxu0 %v60
  %434 = vmatpush.msra.mxu0 %v57
  %435 = vmatpush.msra.mxu0 %v54
  %436 = vmatpush.msra.mxu0 %v51
  %437 = vmatpush.msra.mxu0 %v48
  %438 = vmatpush.msra.mxu0 %v45
  %439 = vmatpush.msra.mxu0 %v42
  %440 = vmatpush.msra.mxu0 %v39
  %441 = vmatpush.msra.mxu0 %v36
  %442 = vmatpush.msra.mxu0 %v33
  %443 = vmatpush.msra.mxu0 %v30
  %444 = vmatpush.msra.mxu0 %v27
  %445 = vmatpush.msra.mxu0 %v24
  %446 = vmatpush.msra.mxu0 %v21
  %447 = vmatmul.f32.gmra.mxu0 %v406
  %v448 = vpop.f32.mrf.mxu0
  %v449 = vadd.f32 0.0, %v448
  %450 = vdwg.mxu0
  %451 = vmatpush.msra.mxu0 %v67
  %452 = vmatpush.msra.mxu0 %v64
  %453 = vmatpush.msra.mxu0 %v61
  %454 = vmatpush.msra.mxu0 %v58
  %455 = vmatpush.msra.mxu0 %v55
  %456 = vmatpush.msra.mxu0 %v52
  %457 = vmatpush.msra.mxu0 %v49
  %458 = vmatpush.msra.mxu0 %v46
  %459 = vmatpush.msra.mxu0 %v43
  %460 = vmatpush.msra.mxu0 %v40
  %461 = vmatpush.msra.mxu0 %v37
  %462 = vmatpush.msra.mxu0 %v34
  %463 = vmatpush.msra.mxu0 %v31
  %464 = vmatpush.msra.mxu0 %v28
  %465 = vmatpush.msra.mxu0 %v25
  %466 = vmatpush.msra.mxu0 %v22
  %467 = vmatmul.f32.gmra.mxu0 %v406
  %v468 = vpop.f32.mrf.mxu0
  %v469 = vadd.f32 0.0, %v468
  %470 = vdwg.mxu0
  %v471 = vadd.f32 %v408, %v429
  %v472 = vxor.u32 %v471, 2147483648
  %v473 = vmul.f32 %v472, 1.442695
  %v474 = vpow.pop %v473
  %v475 = vadd.f32 %v474, 1.0
  %v476 = vrcp.pop %v475
  %v477 = vmul.f32 %v475, %v476
  %v478 = vsub.f32 1.0, %v477
  %v479 = vmul.f32 %v476, %v478
  %v480 = vadd.f32 %v476, %v479
  %vm481 = vweird.f32 %v475
  %vm482 = vweird.f32 %v476
  %vm483 = vmor %vm481, %vm482
  %v484 = vsel %vm483, %v476, %v480
  %v485 = vand.u32 2147483647, %v475
  %vm486 = vcmp.eq.f32.partialorder %v485, 8.507059e+37
  %v487 = vand.u32 %v475, 2147483648
  %v488 = vor.u32 1.1754944e-38, %v487
  %v489 = vsel %vm486, %v488, %v484
  %v490 = vmul.f32 1.0, %v489
  %v491 = vadd.f32 %v409, %v449
  %v492 = vxor.u32 %v491, 2147483648
  %v493 = vmul.f32 %v492, 1.442695
  %v494 = vpow.pop %v493
  %v495 = vadd.f32 %v494, 1.0
  %v496 = vrcp.pop %v495
  %v497 = vmul.f32 %v495, %v496
  %v498 = vsub.f32 1.0, %v497
  %v499 = vmul.f32 %v496, %v498
  %v500 = vadd.f32 %v496, %v499
  %vm501 = vweird.f32 %v495
  %vm502 = vweird.f32 %v496
  %vm503 = vmor %vm501, %vm502
  %v504 = vsel %vm503, %v496, %v500
  %v505 = vand.u32 2147483647, %v495
  %vm506 = vcmp.eq.f32.partialorder %v505, 8.507059e+37
  %v507 = vand.u32 %v495, 2147483648
  %v508 = vor.u32 1.1754944e-38, %v507
  %v509 = vsel %vm506, %v508, %v504
  %v510 = vmul.f32 1.0, %v509
  %v511 = vadd.f32 %v469, %v70
  %v512 = vmul.f32 %v490, %v511
  %v513 = vadd.f32 %v410, %v512
  %v514 = vtanh.pop %v513
  %v515 = vsub.f32 1.0, %v510
  %v516 = vmul.f32 %v515, %v514
  %v517 = vmul.f32 %v510, %v406
  %v518 = vadd.f32 %v516, %v517
  %s519 = scalar_lea.vmem %s0, 96
  %v520 = vld [vmem:[%s519] sm:$0xff]
  %v521 = vld [vmem:[%s519 + $0x8] sm:$0xff]
  %v522 = vld [vmem:[%s519 + $0x10] sm:$0xff]
  %523 = vmatpush.msra.mxu0 %v65
  %524 = vmatpush.msra.mxu0 %v62
  %525 = vmatpush.msra.mxu0 %v59
  %526 = vmatpush.msra.mxu0 %v56
  %527 = vmatpush.msra.mxu0 %v53
  %528 = vmatpush.msra.mxu0 %v50
  %529 = vmatpush.msra.mxu0 %v47
  %530 = vmatpush.msra.mxu0 %v44
  %531 = vmatpush.msra.mxu0 %v41
  %532 = vmatpush.msra.mxu0 %v38
  %533 = vmatpush.msra.mxu0 %v35
  %534 = vmatpush.msra.mxu0 %v32
  %535 = vmatpush.msra.mxu0 %v29
  %536 = vmatpush.msra.mxu0 %v26
  %537 = vmatpush.msra.mxu0 %v23
  %538 = vmatpush.msra.mxu0 %v20
  %539 = vmatmul.f32.gmra.mxu0 %v518
  %v540 = vpop.f32.mrf.mxu0
  %v541 = vadd.f32 0.0, %v540
  %542 = vdwg.mxu0
  %543 = vmatpush.msra.mxu0 %v66
  %544 = vmatpush.msra.mxu0 %v63
  %545 = vmatpush.msra.mxu0 %v60
  %546 = vmatpush.msra.mxu0 %v57
  %547 = vmatpush.msra.mxu0 %v54
  %548 = vmatpush.msra.mxu0 %v51
  %549 = vmatpush.msra.mxu0 %v48
  %550 = vmatpush.msra.mxu0 %v45
  %551 = vmatpush.msra.mxu0 %v42
  %552 = vmatpush.msra.mxu0 %v39
  %553 = vmatpush.msra.mxu0 %v36
  %554 = vmatpush.msra.mxu0 %v33
  %555 = vmatpush.msra.mxu0 %v30
  %556 = vmatpush.msra.mxu0 %v27
  %557 = vmatpush.msra.mxu0 %v24
  %558 = vmatpush.msra.mxu0 %v21
  %559 = vmatmul.f32.gmra.mxu0 %v518
  %v560 = vpop.f32.mrf.mxu0
  %v561 = vadd.f32 0.0, %v560
  %562 = vdwg.mxu0
  %563 = vmatpush.msra.mxu0 %v67
  %564 = vmatpush.msra.mxu0 %v64
  %565 = vmatpush.msra.mxu0 %v61
  %566 = vmatpush.msra.mxu0 %v58
  %567 = vmatpush.msra.mxu0 %v55
  %568 = vmatpush.msra.mxu0 %v52
  %569 = vmatpush.msra.mxu0 %v49
  %570 = vmatpush.msra.mxu0 %v46
  %571 = vmatpush.msra.mxu0 %v43
  %572 = vmatpush.msra.mxu0 %v40
  %573 = vmatpush.msra.mxu0 %v37
  %574 = vmatpush.msra.mxu0 %v34
  %575 = vmatpush.msra.mxu0 %v31
  %576 = vmatpush.msra.mxu0 %v28
  %577 = vmatpush.msra.mxu0 %v25
  %578 = vmatpush.msra.mxu0 %v22
  %579 = vmatmul.f32.gmra.mxu0 %v518
  %v580 = vpop.f32.mrf.mxu0
  %v581 = vadd.f32 0.0, %v580
  %582 = vdwg.mxu0
  %v583 = vadd.f32 %v520, %v541
  %v584 = vxor.u32 %v583, 2147483648
  %v585 = vmul.f32 %v584, 1.442695
  %v586 = vpow.pop %v585
  %v587 = vadd.f32 %v586, 1.0
  %v588 = vrcp.pop %v587
  %v589 = vmul.f32 %v587, %v588
  %v590 = vsub.f32 1.0, %v589
  %v591 = vmul.f32 %v588, %v590
  %v592 = vadd.f32 %v588, %v591
  %vm593 = vweird.f32 %v587
  %vm594 = vweird.f32 %v588
  %vm595 = vmor %vm593, %vm594
  %v596 = vsel %vm595, %v588, %v592
  %v597 = vand.u32 2147483647, %v587
  %vm598 = vcmp.eq.f32.partialorder %v597, 8.507059e+37
  %v599 = vand.u32 %v587, 2147483648
  %v600 = vor.u32 1.1754944e-38, %v599
  %v601 = vsel %vm598, %v600, %v596
  %v602 = vmul.f32 1.0, %v601
  %v603 = vadd.f32 %v521, %v561
  %v604 = vxor.u32 %v603, 2147483648
  %v605 = vmul.f32 %v604, 1.442695
  %v606 = vpow.pop %v605
  %v607 = vadd.f32 %v606, 1.0
  %v608 = vrcp.pop %v607
  %v609 = vmul.f32 %v607, %v608
  %v610 = vsub.f32 1.0, %v609
  %v611 = vmul.f32 %v608, %v610
  %v612 = vadd.f32 %v608, %v611
  %vm613 = vweird.f32 %v607
  %vm614 = vweird.f32 %v608
  %vm615 = vmor %vm613, %vm614
  %v616 = vsel %vm615, %v608, %v612
  %v617 = vand.u32 2147483647, %v607
  %vm618 = vcmp.eq.f32.partialorder %v617, 8.507059e+37
  %v619 = vand.u32 %v607, 2147483648
  %v620 = vor.u32 1.1754944e-38, %v619
  %v621 = vsel %vm618, %v620, %v616
  %v622 = vmul.f32 1.0, %v621
  %v623 = vadd.f32 %v581, %v70
  %v624 = vmul.f32 %v602, %v623
  %v625 = vadd.f32 %v522, %v624
  %v626 = vtanh.pop %v625
  %v627 = vsub.f32 1.0, %v622
  %v628 = vmul.f32 %v627, %v626
  %v629 = vmul.f32 %v622, %v518
  %v630 = vadd.f32 %v628, %v629
  %s631 = scalar_lea.vmem %s0, 120
  %v632 = vld [vmem:[%s631] sm:$0xff]
  %v633 = vld [vmem:[%s631 + $0x8] sm:$0xff]
  %v634 = vld [vmem:[%s631 + $0x10] sm:$0xff]
  %635 = vmatpush.msra.mxu0 %v65
  %636 = vmatpush.msra.mxu0 %v62
  %637 = vmatpush.msra.mxu0 %v59
  %638 = vmatpush.msra.mxu0 %v56
  %639 = vmatpush.msra.mxu0 %v53
  %640 = vmatpush.msra.mxu0 %v50
  %641 = vmatpush.msra.mxu0 %v47
  %642 = vmatpush.msra.mxu0 %v44
  %643 = vmatpush.msra.mxu0 %v41
  %644 = vmatpush.msra.mxu0 %v38
  %645 = vmatpush.msra.mxu0 %v35
  %646 = vmatpush.msra.mxu0 %v32
  %647 = vmatpush.msra.mxu0 %v29
  %648 = vmatpush.msra.mxu0 %v26
  %649 = vmatpush.msra.mxu0 %v23
  %650 = vmatpush.msra.mxu0 %v20
  %651 = vmatmul.f32.gmra.mxu0 %v630
  %v652 = vpop.f32.mrf.mxu0
  %v653 = vadd.f32 0.0, %v652
  %654 = vdwg.mxu0
  %655 = vmatpush.msra.mxu0 %v66
  %656 = vmatpush.msra.mxu0 %v63
  %657 = vmatpush.msra.mxu0 %v60
  %658 = vmatpush.msra.mxu0 %v57
  %659 = vmatpush.msra.mxu0 %v54
  %660 = vmatpush.msra.mxu0 %v51
  %661 = vmatpush.msra.mxu0 %v48
  %662 = vmatpush.msra.mxu0 %v45
  %663 = vmatpush.msra.mxu0 %v42
  %664 = vmatpush.msra.mxu0 %v39
  %665 = vmatpush.msra.mxu0 %v36
  %666 = vmatpush.msra.mxu0 %v33
  %667 = vmatpush.msra.mxu0 %v30
  %668 = vmatpush.msra.mxu0 %v27
  %669 = vmatpush.msra.mxu0 %v24
  %670 = vmatpush.msra.mxu0 %v21
  %671 = vmatmul.f32.gmra.mxu0 %v630
  %v672 = vpop.f32.mrf.mxu0
  %v673 = vadd.f32 0.0, %v672
  %674 = vdwg.mxu0
  %675 = vmatpush.msra.mxu0 %v67
  %676 = vmatpush.msra.mxu0 %v64
  %677 = vmatpush.msra.mxu0 %v61
  %678 = vmatpush.msra.mxu0 %v58
  %679 = vmatpush.msra.mxu0 %v55
  %680 = vmatpush.msra.mxu0 %v52
  %681 = vmatpush.msra.mxu0 %v49
  %682 = vmatpush.msra.mxu0 %v46
  %683 = vmatpush.msra.mxu0 %v43
  %684 = vmatpush.msra.mxu0 %v40
  %685 = vmatpush.msra.mxu0 %v37
  %686 = vmatpush.msra.mxu0 %v34
  %687 = vmatpush.msra.mxu0 %v31
  %688 = vmatpush.msra.mxu0 %v28
  %689 = vmatpush.msra.mxu0 %v25
  %690 = vmatpush.msra.mxu0 %v22
  %691 = vmatmul.f32.gmra.mxu0 %v630
  %v692 = vpop.f32.mrf.mxu0
  %v693 = vadd.f32 0.0, %v692
  %694 = vdwg.mxu0
  %v695 = vadd.f32 %v632, %v653
  %v696 = vxor.u32 %v695, 2147483648
  %v697 = vmul.f32 %v696, 1.442695
  %v698 = vpow.pop %v697
  %v699 = vadd.f32 %v698, 1.0
  %v700 = vrcp.pop %v699
  %v701 = vmul.f32 %v699, %v700
  %v702 = vsub.f32 1.0, %v701
  %v703 = vmul.f32 %v700, %v702
  %v704 = vadd.f32 %v700, %v703
  %vm705 = vweird.f32 %v699
  %vm706 = vweird.f32 %v700
  %vm707 = vmor %vm705, %vm706
  %v708 = vsel %vm707, %v700, %v704
  %v709 = vand.u32 2147483647, %v699
  %vm710 = vcmp.eq.f32.partialorder %v709, 8.507059e+37
  %v711 = vand.u32 %v699, 2147483648
  %v712 = vor.u32 1.1754944e-38, %v711
  %v713 = vsel %vm710, %v712, %v708
  %v714 = vmul.f32 1.0, %v713
  %v715 = vadd.f32 %v633, %v673
  %v716 = vxor.u32 %v715, 2147483648
  %v717 = vmul.f32 %v716, 1.442695
  %v718 = vpow.pop %v717
  %v719 = vadd.f32 %v718, 1.0
  %v720 = vrcp.pop %v719
  %v721 = vmul.f32 %v719, %v720
  %v722 = vsub.f32 1.0, %v721
  %v723 = vmul.f32 %v720, %v722
  %v724 = vadd.f32 %v720, %v723
  %vm725 = vweird.f32 %v719
  %vm726 = vweird.f32 %v720
  %vm727 = vmor %vm725, %vm726
  %v728 = vsel %vm727, %v720, %v724
  %v729 = vand.u32 2147483647, %v719
  %vm730 = vcmp.eq.f32.partialorder %v729, 8.507059e+37
  %v731 = vand.u32 %v719, 2147483648
  %v732 = vor.u32 1.1754944e-38, %v731
  %v733 = vsel %vm730, %v732, %v728
  %v734 = vmul.f32 1.0, %v733
  %v735 = vadd.f32 %v693, %v70
  %v736 = vmul.f32 %v714, %v735
  %v737 = vadd.f32 %v634, %v736
  %v738 = vtanh.pop %v737
  %v739 = vsub.f32 1.0, %v734
  %v740 = vmul.f32 %v739, %v738
  %v741 = vmul.f32 %v734, %v630
  %v742 = vadd.f32 %v740, %v741
  %s743 = scalar_lea.vmem %s0, 144
  %v744 = vld [vmem:[%s743] sm:$0xff]
  %v745 = vld [vmem:[%s743 + $0x8] sm:$0xff]
  %v746 = vld [vmem:[%s743 + $0x10] sm:$0xff]
  %747 = vmatpush.msra.mxu0 %v65
  %748 = vmatpush.msra.mxu0 %v62
  %749 = vmatpush.msra.mxu0 %v59
  %750 = vmatpush.msra.mxu0 %v56
  %751 = vmatpush.msra.mxu0 %v53
  %752 = vmatpush.msra.mxu0 %v50
  %753 = vmatpush.msra.mxu0 %v47
  %754 = vmatpush.msra.mxu0 %v44
  %755 = vmatpush.msra.mxu0 %v41
  %756 = vmatpush.msra.mxu0 %v38
  %757 = vmatpush.msra.mxu0 %v35
  %758 = vmatpush.msra.mxu0 %v32
  %759 = vmatpush.msra.mxu0 %v29
  %760 = vmatpush.msra.mxu0 %v26
  %761 = vmatpush.msra.mxu0 %v23
  %762 = vmatpush.msra.mxu0 %v20
  %763 = vmatmul.f32.gmra.mxu0 %v742
  %v764 = vpop.f32.mrf.mxu0
  %v765 = vadd.f32 0.0, %v764
  %766 = vdwg.mxu0
  %767 = vmatpush.msra.mxu0 %v66
  %768 = vmatpush.msra.mxu0 %v63
  %769 = vmatpush.msra.mxu0 %v60
  %770 = vmatpush.msra.mxu0 %v57
  %771 = vmatpush.msra.mxu0 %v54
  %772 = vmatpush.msra.mxu0 %v51
  %773 = vmatpush.msra.mxu0 %v48
  %774 = vmatpush.msra.mxu0 %v45
  %775 = vmatpush.msra.mxu0 %v42
  %776 = vmatpush.msra.mxu0 %v39
  %777 = vmatpush.msra.mxu0 %v36
  %778 = vmatpush.msra.mxu0 %v33
  %779 = vmatpush.msra.mxu0 %v30
  %780 = vmatpush.msra.mxu0 %v27
  %781 = vmatpush.msra.mxu0 %v24
  %782 = vmatpush.msra.mxu0 %v21
  %783 = vmatmul.f32.gmra.mxu0 %v742
  %v784 = vpop.f32.mrf.mxu0
  %v785 = vadd.f32 0.0, %v784
  %786 = vdwg.mxu0
  %787 = vmatpush.msra.mxu0 %v67
  %788 = vmatpush.msra.mxu0 %v64
  %789 = vmatpush.msra.mxu0 %v61
  %790 = vmatpush.msra.mxu0 %v58
  %791 = vmatpush.msra.mxu0 %v55
  %792 = vmatpush.msra.mxu0 %v52
  %793 = vmatpush.msra.mxu0 %v49
  %794 = vmatpush.msra.mxu0 %v46
  %795 = vmatpush.msra.mxu0 %v43
  %796 = vmatpush.msra.mxu0 %v40
  %797 = vmatpush.msra.mxu0 %v37
  %798 = vmatpush.msra.mxu0 %v34
  %799 = vmatpush.msra.mxu0 %v31
  %800 = vmatpush.msra.mxu0 %v28
  %801 = vmatpush.msra.mxu0 %v25
  %802 = vmatpush.msra.mxu0 %v22
  %803 = vmatmul.f32.gmra.mxu0 %v742
  %v804 = vpop.f32.mrf.mxu0
  %v805 = vadd.f32 0.0, %v804
  %806 = vdwg.mxu0
  %v807 = vadd.f32 %v744, %v765
  %v808 = vxor.u32 %v807, 2147483648
  %v809 = vmul.f32 %v808, 1.442695
  %v810 = vpow.pop %v809
  %v811 = vadd.f32 %v810, 1.0
  %v812 = vrcp.pop %v811
  %v813 = vmul.f32 %v811, %v812
  %v814 = vsub.f32 1.0, %v813
  %v815 = vmul.f32 %v812, %v814
  %v816 = vadd.f32 %v812, %v815
  %vm817 = vweird.f32 %v811
  %vm818 = vweird.f32 %v812
  %vm819 = vmor %vm817, %vm818
  %v820 = vsel %vm819, %v812, %v816
  %v821 = vand.u32 2147483647, %v811
  %vm822 = vcmp.eq.f32.partialorder %v821, 8.507059e+37
  %v823 = vand.u32 %v811, 2147483648
  %v824 = vor.u32 1.1754944e-38, %v823
  %v825 = vsel %vm822, %v824, %v820
  %v826 = vmul.f32 1.0, %v825
  %v827 = vadd.f32 %v745, %v785
  %v828 = vxor.u32 %v827, 2147483648
  %v829 = vmul.f32 %v828, 1.442695
  %v830 = vpow.pop %v829
  %v831 = vadd.f32 %v830, 1.0
  %v832 = vrcp.pop %v831
  %v833 = vmul.f32 %v831, %v832
  %v834 = vsub.f32 1.0, %v833
  %v835 = vmul.f32 %v832, %v834
  %v836 = vadd.f32 %v832, %v835
  %vm837 = vweird.f32 %v831
  %vm838 = vweird.f32 %v832
  %vm839 = vmor %vm837, %vm838
  %v840 = vsel %vm839, %v832, %v836
  %v841 = vand.u32 2147483647, %v831
  %vm842 = vcmp.eq.f32.partialorder %v841, 8.507059e+37
  %v843 = vand.u32 %v831, 2147483648
  %v844 = vor.u32 1.1754944e-38, %v843
  %v845 = vsel %vm842, %v844, %v840
  %v846 = vmul.f32 1.0, %v845
  %v847 = vadd.f32 %v805, %v70
  %v848 = vmul.f32 %v826, %v847
  %v849 = vadd.f32 %v746, %v848
  %v850 = vtanh.pop %v849
  %v851 = vsub.f32 1.0, %v846
  %v852 = vmul.f32 %v851, %v850
  %v853 = vmul.f32 %v846, %v742
  %v854 = vadd.f32 %v852, %v853
  %s855 = scalar_lea.vmem %s0, 168
  %v856 = vld [vmem:[%s855] sm:$0xff]
  %v857 = vld [vmem:[%s855 + $0x8] sm:$0xff]
  %v858 = vld [vmem:[%s855 + $0x10] sm:$0xff]
  %859 = vmatpush.msra.mxu0 %v65
  %860 = vmatpush.msra.mxu0 %v62
  %861 = vmatpush.msra.mxu0 %v59
  %862 = vmatpush.msra.mxu0 %v56
  %863 = vmatpush.msra.mxu0 %v53
  %864 = vmatpush.msra.mxu0 %v50
  %865 = vmatpush.msra.mxu0 %v47
  %866 = vmatpush.msra.mxu0 %v44
  %867 = vmatpush.msra.mxu0 %v41
  %868 = vmatpush.msra.mxu0 %v38
  %869 = vmatpush.msra.mxu0 %v35
  %870 = vmatpush.msra.mxu0 %v32
  %871 = vmatpush.msra.mxu0 %v29
  %872 = vmatpush.msra.mxu0 %v26
  %873 = vmatpush.msra.mxu0 %v23
  %874 = vmatpush.msra.mxu0 %v20
  %875 = vmatmul.f32.gmra.mxu0 %v854
  %v876 = vpop.f32.mrf.mxu0
  %v877 = vadd.f32 0.0, %v876
  %878 = vdwg.mxu0
  %879 = vmatpush.msra.mxu0 %v66
  %880 = vmatpush.msra.mxu0 %v63
  %881 = vmatpush.msra.mxu0 %v60
  %882 = vmatpush.msra.mxu0 %v57
  %883 = vmatpush.msra.mxu0 %v54
  %884 = vmatpush.msra.mxu0 %v51
  %885 = vmatpush.msra.mxu0 %v48
  %886 = vmatpush.msra.mxu0 %v45
  %887 = vmatpush.msra.mxu0 %v42
  %888 = vmatpush.msra.mxu0 %v39
  %889 = vmatpush.msra.mxu0 %v36
  %890 = vmatpush.msra.mxu0 %v33
  %891 = vmatpush.msra.mxu0 %v30
  %892 = vmatpush.msra.mxu0 %v27
  %893 = vmatpush.msra.mxu0 %v24
  %894 = vmatpush.msra.mxu0 %v21
  %895 = vmatmul.f32.gmra.mxu0 %v854
  %v896 = vpop.f32.mrf.mxu0
  %v897 = vadd.f32 0.0, %v896
  %898 = vdwg.mxu0
  %899 = vmatpush.msra.mxu0 %v67
  %900 = vmatpush.msra.mxu0 %v64
  %901 = vmatpush.msra.mxu0 %v61
  %902 = vmatpush.msra.mxu0 %v58
  %903 = vmatpush.msra.mxu0 %v55
  %904 = vmatpush.msra.mxu0 %v52
  %905 = vmatpush.msra.mxu0 %v49
  %906 = vmatpush.msra.mxu0 %v46
  %907 = vmatpush.msra.mxu0 %v43
  %908 = vmatpush.msra.mxu0 %v40
  %909 = vmatpush.msra.mxu0 %v37
  %910 = vmatpush.msra.mxu0 %v34
  %911 = vmatpush.msra.mxu0 %v31
  %912 = vmatpush.msra.mxu0 %v28
  %913 = vmatpush.msra.mxu0 %v25
  %914 = vmatpush.msra.mxu0 %v22
  %915 = vmatmul.f32.gmra.mxu0 %v854
  %v916 = vpop.f32.mrf.mxu0
  %v917 = vadd.f32 0.0, %v916
  %918 = vdwg.mxu0
  %v919 = vadd.f32 %v856, %v877
  %v920 = vxor.u32 %v919, 2147483648
  %v921 = vmul.f32 %v920, 1.442695
  %v922 = vpow.pop %v921
  %v923 = vadd.f32 %v922, 1.0
  %v924 = vrcp.pop %v923
  %v925 = vmul.f32 %v923, %v924
  %v926 = vsub.f32 1.0, %v925
  %v927 = vmul.f32 %v924, %v926
  %v928 = vadd.f32 %v924, %v927
  %vm929 = vweird.f32 %v923
  %vm930 = vweird.f32 %v924
  %vm931 = vmor %vm929, %vm930
  %v932 = vsel %vm931, %v924, %v928
  %v933 = vand.u32 2147483647, %v923
  %vm934 = vcmp.eq.f32.partialorder %v933, 8.507059e+37
  %v935 = vand.u32 %v923, 2147483648
  %v936 = vor.u32 1.1754944e-38, %v935
  %v937 = vsel %vm934, %v936, %v932
  %v938 = vmul.f32 1.0, %v937
  %v939 = vadd.f32 %v857, %v897
  %v940 = vxor.u32 %v939, 2147483648
  %v941 = vmul.f32 %v940, 1.442695
  %v942 = vpow.pop %v941
  %v943 = vadd.f32 %v942, 1.0
  %v944 = vrcp.pop %v943
  %v945 = vmul.f32 %v943, %v944
  %v946 = vsub.f32 1.0, %v945
  %v947 = vmul.f32 %v944, %v946
  %v948 = vadd.f32 %v944, %v947
  %vm949 = vweird.f32 %v943
  %vm950 = vweird.f32 %v944
  %vm951 = vmor %vm949, %vm950
  %v952 = vsel %vm951, %v944, %v948
  %v953 = vand.u32 2147483647, %v943
  %vm954 = vcmp.eq.f32.partialorder %v953, 8.507059e+37
  %v955 = vand.u32 %v943, 2147483648
  %v956 = vor.u32 1.1754944e-38, %v955
  %v957 = vsel %vm954, %v956, %v952
  %v958 = vmul.f32 1.0, %v957
  %v959 = vadd.f32 %v917, %v70
  %v960 = vmul.f32 %v938, %v959
  %v961 = vadd.f32 %v858, %v960
  %v962 = vtanh.pop %v961
  %v963 = vsub.f32 1.0, %v958
  %v964 = vmul.f32 %v963, %v962
  %v965 = vmul.f32 %v958, %v854
  %v966 = vadd.f32 %v964, %v965
  %v967 = vld [vmem:[%s3] sm:$0xff]
  %v968 = vld [vmem:[%s3 + $0x8] sm:$0xff]
  %v969 = vld [vmem:[%s3 + $0x10] sm:$0xff]
  %v970 = vld [vmem:[%s3 + $0x18] sm:$0xff]
  %v971 = vld [vmem:[%s3 + $0x20] sm:$0xff]
  %v972 = vld [vmem:[%s3 + $0x28] sm:$0xff]
  %v973 = vld [vmem:[%s3 + $0x30] sm:$0xff]
  %v974 = vld [vmem:[%s3 + $0x38] sm:$0xff]
  %v975 = vld [vmem:[%s3 + $0x40] sm:$0xff]
  %v976 = vld [vmem:[%s3 + $0x48] sm:$0xff]
  %v977 = vld [vmem:[%s3 + $0x50] sm:$0xff]
  %v978 = vld [vmem:[%s3 + $0x58] sm:$0xff]
  %v979 = vld [vmem:[%s3 + $0x60] sm:$0xff]
  %v980 = vld [vmem:[%s3 + $0x68] sm:$0xff]
  %v981 = vld [vmem:[%s3 + $0x70] sm:$0xff]
  %v982 = vld [vmem:[%s3 + $0x78] sm:$0xff]
  %v983 = vld [vmem:[%s4] sm:$0x1]
  %v985 = vperm.slane %v983, 0
  %987 = vmatpush.msra.mxu0 %v982
  %988 = vmatpush.msra.mxu0 %v981
  %989 = vmatpush.msra.mxu0 %v980
  %990 = vmatpush.msra.mxu0 %v979
  %991 = vmatpush.msra.mxu0 %v978
  %992 = vmatpush.msra.mxu0 %v977
  %993 = vmatpush.msra.mxu0 %v976
  %994 = vmatpush.msra.mxu0 %v975
  %995 = vmatpush.msra.mxu0 %v974
  %996 = vmatpush.msra.mxu0 %v973
  %997 = vmatpush.msra.mxu0 %v972
  %998 = vmatpush.msra.mxu0 %v971
  %999 = vmatpush.msra.mxu0 %v970
  %1000 = vmatpush.msra.mxu0 %v969
  %1001 = vmatpush.msra.mxu0 %v968
  %1002 = vmatpush.msra.mxu0 %v967
  %1003 = vmatmul.f32.gmra.mxu0 %v966
  %v1004 = vpop.f32.mrf.mxu0
  %v1005 = vadd.f32 %v985, %v1004
  %1006 = vdwg.mxu0
  %1007 = vst [vmem:[%s5] sm:$0xff] %v1005
  // Predicated region
  $region22: #{gru_net_forward.1} parent=0 // pred_check
    _
  $region23: #{gru_net_forward.1} parent=0 // pred_check_branch
    %1009 = sbr.rel (0) target = $region25
  $region24: #{gru_net_forward.1} parent=0 // pred_region
    _
  $region25: #{gru_net_forward.1} parent=0 // pred_fallthru
    _
  // Predicated region
  $region26: #{gru_net_forward.1} parent=0 // pred_check
    _
  $region27: #{gru_net_forward.1} parent=0 // pred_check_branch
    %1011 = sbr.rel (0) target = $region29
  $region28: #{gru_net_forward.1} parent=0 // pred_region
    _
  $region29: #{gru_net_forward.1} parent=0 // pred_fallthru
    _

</llo_original>
